<compile_context>
chip_gen: v7x
topology: tpu7x:2x2x1
jax: 0.10.0
libtpu: 0.0.40
codegen_flags: <defaults>
</compile_context>

<pallas_src>
import functools
import math

import jax
import jax.numpy as jnp
from jax import lax
from jax.experimental import pallas as pl
from jax.experimental.pallas import tpu as pltpu


_SQRT_2_OVER_PI = math.sqrt(2.0 / math.pi)
_INV_SQRT_2 = 1.0 / math.sqrt(2.0)
_LANE = 128      # lane width (last-dim alignment)
_SUBLANE = 8     # sublane height (second-to-last-dim alignment)


def _round_up(x: int, m: int) -> int:
    return (x + m - 1) // m * m


def _gelu(x, approximate: bool):
    if approximate:
        # tanh GELU: one EUP push per element (own VLIW slot, ~free next to MXU).
        return 0.5 * x * (1.0 + jnp.tanh(_SQRT_2_OVER_PI * (x + 0.044715 * x * x * x)))
    # exact erf GELU (PyTorch nn.GELU(approximate='none') semantics).
    return 0.5 * x * (1.0 + lax.erf(x * _INV_SQRT_2))


def _fused_mlp_kernel(*refs, n_layers: int, approximate_gelu: bool):
    """Entire MLP in one kernel.  refs = (x, w0, b0, ..., w_{L-1}, b_{L-1}, out)."""
    x_ref = refs[0]
    o_ref = refs[-1]
    wb = refs[1:-1]

    x = x_ref[...]                            # (TM, K0_pad) f32
    for li in range(n_layers):
        w = wb[2 * li][...]                   # (K_pad, N_pad) bf16 (or f32), resident
        b = wb[2 * li + 1][...]               # (1, N_pad) f32, broadcasts over rows
        x = jnp.dot(x.astype(w.dtype), w, preferred_element_type=jnp.float32) + b
        if li < n_layers - 1:
            x = _gelu(x, approximate_gelu)    # Dropout == identity in eval mode
    o_ref[...] = x                            # lane-dense store (N_pad % 128 == 0)


def fused_mlp(x, params, *, approximate_gelu: bool = True, tm_max: int = 512,
              core_parallel: bool = False):
    """x: (M, K0) f32.  params: PRE-PADDED [(w:(K_pad,N_pad), b:(1,N_pad) f32), ...]
    with every K_pad / N_pad a multiple of 128.  Returns the PADDED
    (m_pad, N_out_pad) output; callers slice lazily (ideally under the same jit)."""
    M, K0 = x.shape
    n_layers = len(params)
    k0_pad = params[0][0].shape[0]
    n_out_pad = params[-1][0].shape[1]

    # Resident-weight budget (v7x has only 64 MiB VMEM per TensorCore).
    weight_bytes = sum(int(w.size) * w.dtype.itemsize + int(b.size) * b.dtype.itemsize
                       for w, b in params)
    if weight_bytes > (40 << 20):
        # TODO(synk): stream weights layer-by-layer (pltpu.emit_pipeline / layer grid
        # axis) for configs whose resident weights exceed v7x's 64 MiB VMEM budget.
        raise NotImplementedError(
            "resident-weight path requires <= ~40 MiB of (padded) weights")

    # ---- batch (sublane) tiling ----
    m_pad = _round_up(max(M, _SUBLANE), _SUBLANE)
    tm = min(tm_max, m_pad)
    if core_parallel and m_pad >= 2 * _SUBLANE:
        # guarantee >= 2 grid steps so both v7x TensorCores get work
        tm = min(tm, _round_up(m_pad // 2, _SUBLANE))
    m_pad = _round_up(m_pad, tm)
    grid_m = m_pad // tm

    if (m_pad != M) or (k0_pad != K0):
        x = jnp.pad(x, ((0, m_pad - M), (0, k0_pad - K0)))

    # ---- VMEM budget: single-buffered weights/biases + double-buffered x/out tiles
    #      + headroom for traced intermediate activations ----
    max_width = max(w.shape[1] for w, _ in params)
    act_bytes = (2 * tm * k0_pad * 4) + (2 * tm * n_out_pad * 4) + (4 * tm * max_width * 4)
    vmem_limit = int(min(64 << 20, max(16 << 20, 2 * (weight_bytes + act_bytes) + (2 << 20))))

    flops = 2 * m_pad * sum(w.shape[0] * w.shape[1] for w, _ in params)
    transcendentals = m_pad * sum(w.shape[1] for w, _ in params[:-1])
    bytes_accessed = int(x.size) * 4 + weight_bytes + m_pad * n_out_pad * 4

    kernel = functools.partial(_fused_mlp_kernel, n_layers=n_layers,
                               approximate_gelu=approximate_gelu)

    # activation stream: tiled over the batch axis
    in_specs = [pl.BlockSpec((tm, k0_pad), lambda i: (i, 0))]
    flat_inputs = [x]
    for (w, b) in params:
        kw, nw = w.shape
        # constant index_map -> same block every grid step -> single buffer suffices
        in_specs.append(pl.BlockSpec((kw, nw), lambda i: (0, 0),
                                     pipeline_mode=pl.Buffered(1)))
        in_specs.append(pl.BlockSpec((1, nw), lambda i: (0, 0),
                                     pipeline_mode=pl.Buffered(1)))
        flat_inputs.extend([w, b])

    dim_sem = (pltpu.CORE_PARALLEL,) if core_parallel else ("parallel",)

    return pl.pallas_call(
        kernel,
        out_shape=jax.ShapeDtypeStruct((m_pad, n_out_pad), jnp.float32),
        grid=(grid_m,),
        in_specs=in_specs,
        out_specs=pl.BlockSpec((tm, n_out_pad), lambda i: (i, 0)),
        compiler_params=pltpu.CompilerParams(
            dimension_semantics=dim_sem,
            vmem_limit_bytes=vmem_limit,
        ),
        cost_estimate=pl.CostEstimate(flops=int(flops),
                                      transcendentals=int(transcendentals),
                                      bytes_accessed=int(bytes_accessed)),
    )(*flat_inputs)


def _actor_forward(obs, params, *, action_size, approximate_gelu, tm_max, core_parallel):
    out = fused_mlp(obs, params, approximate_gelu=approximate_gelu,
                    tm_max=tm_max, core_parallel=core_parallel)
    # Slice back to the logical shape *inside* the jit so it fuses with the call.
    return out[:obs.shape[0], :action_size]


class ActorPallas:
    """Pallas equivalent of the PyTorch `Actor` module (fused MLP projection)."""

    def __init__(self, obs_size: int, action_size: int, mlp_layer: str, key, *,
                 approximate_gelu: bool = True, weight_dtype=jnp.bfloat16,
                 lane_multiple: int = _LANE, tm_max: int = 512,
                 core_parallel: bool = False):
        sizes = [obs_size] + [int(i) for i in mlp_layer.split(",")] + [action_size]
        padded = [_round_up(s, lane_multiple) for s in sizes]
        self.action_size = action_size

        params = []
        for li, (i, o) in enumerate(zip(sizes, sizes[1:])):
            key, kw, kb = jax.random.split(key, 3)
            # deterministic init mimicking nn.Linear's kaiming-uniform bounds
            bound = 1.0 / math.sqrt(i)
            w = jax.random.uniform(kw, (i, o), jnp.float32, -bound, bound)
            b = jax.random.uniform(kb, (1, o), jnp.float32, -bound, bound)
            ip, op = padded[li], padded[li + 1]
            # one-time zero padding (hoisted out of the hot path)
            w = jnp.pad(w, ((0, ip - i), (0, op - o))).astype(weight_dtype)
            b = jnp.pad(b, ((0, 0), (0, op - o)))            # bias stays f32
            params.append((w, b))
        self.params = params

        self._forward = jax.jit(functools.partial(
            _actor_forward, action_size=action_size,
            approximate_gelu=approximate_gelu, tm_max=tm_max,
            core_parallel=core_parallel))

    def __call__(self, obs, neighbor_obs=None, neighbor_mask=None):
        return self._forward(obs, self.params)


def actor_reference(obs, params, action_size, approximate_gelu):
    """Pure-JAX reference mirroring the kernel math (same dtypes / padding)."""
    k0_pad = params[0][0].shape[0]
    x = jnp.pad(obs, ((0, 0), (0, k0_pad - obs.shape[1])))
    for li, (w, b) in enumerate(params):
        x = jnp.dot(x.astype(w.dtype), w, preferred_element_type=jnp.float32) + b
        if li < len(params) - 1:
            x = _gelu(x, approximate_gelu)
    return x[:, :action_size]


if __name__ == "__main__":
    key = jax.random.PRNGKey(0)
    k_obs, k_model = jax.random.split(key)

    batch = 8
    obs_size = 32
    action_size = 8
    mlp_layer = "64,32"

    obs = jax.random.normal(k_obs, (batch, obs_size), jnp.float32)

    # Fast path (default): bf16 weights + tanh GELU.
    actor = ActorPallas(obs_size, action_size, mlp_layer, k_model)
    out = jax.block_until_ready(actor(obs))
    ref = actor_reference(obs, actor.params, action_size, approximate_gelu=True)
    assert out.shape == (batch, action_size), out.shape
    assert jnp.allclose(out, ref, atol=5e-3, rtol=5e-3), (
        float(jnp.max(jnp.abs(out - ref))))

    # Parity path: f32 weights + exact erf GELU (PyTorch nn.GELU default semantics).
    # Tolerance is loose enough to absorb MXU f32-via-bf16-passes rounding.
    actor_exact = ActorPallas(obs_size, action_size, mlp_layer, k_model,
                              approximate_gelu=False, weight_dtype=jnp.float32)
    out_exact = jax.block_until_ready(actor_exact(obs))
    ref_exact = actor_reference(obs, actor_exact.params, action_size,
                                approximate_gelu=False)
    assert out_exact.shape == (batch, action_size), out_exact.shape
    assert jnp.allclose(out_exact, ref_exact, atol=2e-2, rtol=2e-2), (
        float(jnp.max(jnp.abs(out_exact - ref_exact))))

    print("KERNEL_OK")
</pallas_src>

<mosaic_0001>
module attributes {stable_mosaic.version = 11 : i64} {
  func.func @_fused_mlp_kernel(%arg0: i32, %arg1: memref<8x128xf32, #tpu.memory_space<vmem>>, %arg2: memref<128x128xbf16, #tpu.memory_space<vmem>>, %arg3: memref<1x128xf32, #tpu.memory_space<vmem>>, %arg4: memref<128x128xbf16, #tpu.memory_space<vmem>>, %arg5: memref<1x128xf32, #tpu.memory_space<vmem>>, %arg6: memref<128x128xbf16, #tpu.memory_space<vmem>>, %arg7: memref<1x128xf32, #tpu.memory_space<vmem>>, %arg8: memref<8x128xf32, #tpu.memory_space<vmem>>) attributes {dimension_semantics = [#tpu.dimension_semantics<parallel>], iteration_bounds = array<i64: 1>, scalar_prefetch = 0 : i64, scratch_operands = 0 : i64, tpu.core_type = #tpu.core_type<tc>, window_params = [{transform_indices = @transform_0, window_bounds = array<i64: 8, 128>}, {pipeline_mode = #tpu.pipeline_mode<synchronous>, transform_indices = @transform_1, window_bounds = array<i64: 128, 128>}, {pipeline_mode = #tpu.pipeline_mode<synchronous>, transform_indices = @transform_2, window_bounds = array<i64: 1, 128>}, {pipeline_mode = #tpu.pipeline_mode<synchronous>, transform_indices = @transform_3, window_bounds = array<i64: 128, 128>}, {pipeline_mode = #tpu.pipeline_mode<synchronous>, transform_indices = @transform_4, window_bounds = array<i64: 1, 128>}, {pipeline_mode = #tpu.pipeline_mode<synchronous>, transform_indices = @transform_5, window_bounds = array<i64: 128, 128>}, {pipeline_mode = #tpu.pipeline_mode<synchronous>, transform_indices = @transform_6, window_bounds = array<i64: 1, 128>}, {transform_indices = @transform_7, window_bounds = array<i64: 8, 128>}]} {
    %c0 = arith.constant 0 : index
    %c0_0 = arith.constant 0 : index
    %0 = vector.load %arg1[%c0, %c0_0] : memref<8x128xf32, #tpu.memory_space<vmem>>, vector<8x128xf32>
    %c0_1 = arith.constant 0 : index
    %c0_2 = arith.constant 0 : index
    %1 = vector.load %arg2[%c0_1, %c0_2] : memref<128x128xbf16, #tpu.memory_space<vmem>>, vector<128x128xbf16>
    %c0_3 = arith.constant 0 : index
    %c0_4 = arith.constant 0 : index
    %2 = vector.load %arg3[%c0_3, %c0_4] : memref<1x128xf32, #tpu.memory_space<vmem>>, vector<1x128xf32>
    %3 = arith.truncf %0 : vector<8x128xf32> to vector<8x128xbf16>
    %cst = arith.constant dense<0.000000e+00> : vector<8x128xf32>
    %4 = tpu.matmul %3, %1, %cst {dimension_numbers = #tpu.dot_dimension_numbers<[1], [0], [0], [1], [0, 0, 1, 1], [], []>} : vector<8x128xbf16>, vector<128x128xbf16>, vector<8x128xf32> -> vector<8x128xf32>
    %5 = vector.broadcast %2 : vector<1x128xf32> to vector<8x128xf32>
    %6 = arith.addf %4, %5 : vector<8x128xf32>
    %cst_5 = arith.constant 5.000000e-01 : f32
    %7 = vector.broadcast %cst_5 : f32 to vector<8x128xf32>
    %8 = arith.mulf %7, %6 : vector<8x128xf32>
    %cst_6 = arith.constant 4.471500e-02 : f32
    %9 = vector.broadcast %cst_6 : f32 to vector<8x128xf32>
    %10 = arith.mulf %9, %6 : vector<8x128xf32>
    %11 = arith.mulf %10, %6 : vector<8x128xf32>
    %12 = arith.mulf %11, %6 : vector<8x128xf32>
    %13 = arith.addf %6, %12 : vector<8x128xf32>
    %cst_7 = arith.constant 0.797884583 : f32
    %14 = vector.broadcast %cst_7 : f32 to vector<8x128xf32>
    %15 = arith.mulf %14, %13 : vector<8x128xf32>
    %16 = math.tanh %15 : vector<8x128xf32>
    %cst_8 = arith.constant 1.000000e+00 : f32
    %17 = vector.broadcast %cst_8 : f32 to vector<8x128xf32>
    %18 = arith.addf %17, %16 : vector<8x128xf32>
    %19 = arith.mulf %8, %18 : vector<8x128xf32>
    %c0_9 = arith.constant 0 : index
    %c0_10 = arith.constant 0 : index
    %20 = vector.load %arg4[%c0_9, %c0_10] : memref<128x128xbf16, #tpu.memory_space<vmem>>, vector<128x128xbf16>
    %c0_11 = arith.constant 0 : index
    %c0_12 = arith.constant 0 : index
    %21 = vector.load %arg5[%c0_11, %c0_12] : memref<1x128xf32, #tpu.memory_space<vmem>>, vector<1x128xf32>
    %22 = arith.truncf %19 : vector<8x128xf32> to vector<8x128xbf16>
    %cst_13 = arith.constant dense<0.000000e+00> : vector<8x128xf32>
    %23 = tpu.matmul %22, %20, %cst_13 {dimension_numbers = #tpu.dot_dimension_numbers<[1], [0], [0], [1], [0, 0, 1, 1], [], []>} : vector<8x128xbf16>, vector<128x128xbf16>, vector<8x128xf32> -> vector<8x128xf32>
    %24 = vector.broadcast %21 : vector<1x128xf32> to vector<8x128xf32>
    %25 = arith.addf %23, %24 : vector<8x128xf32>
    %cst_14 = arith.constant 5.000000e-01 : f32
    %26 = vector.broadcast %cst_14 : f32 to vector<8x128xf32>
    %27 = arith.mulf %26, %25 : vector<8x128xf32>
    %cst_15 = arith.constant 4.471500e-02 : f32
    %28 = vector.broadcast %cst_15 : f32 to vector<8x128xf32>
    %29 = arith.mulf %28, %25 : vector<8x128xf32>
    %30 = arith.mulf %29, %25 : vector<8x128xf32>
    %31 = arith.mulf %30, %25 : vector<8x128xf32>
    %32 = arith.addf %25, %31 : vector<8x128xf32>
    %cst_16 = arith.constant 0.797884583 : f32
    %33 = vector.broadcast %cst_16 : f32 to vector<8x128xf32>
    %34 = arith.mulf %33, %32 : vector<8x128xf32>
    %35 = math.tanh %34 : vector<8x128xf32>
    %cst_17 = arith.constant 1.000000e+00 : f32
    %36 = vector.broadcast %cst_17 : f32 to vector<8x128xf32>
    %37 = arith.addf %36, %35 : vector<8x128xf32>
    %38 = arith.mulf %27, %37 : vector<8x128xf32>
    %c0_18 = arith.constant 0 : index
    %c0_19 = arith.constant 0 : index
    %39 = vector.load %arg6[%c0_18, %c0_19] : memref<128x128xbf16, #tpu.memory_space<vmem>>, vector<128x128xbf16>
    %c0_20 = arith.constant 0 : index
    %c0_21 = arith.constant 0 : index
    %40 = vector.load %arg7[%c0_20, %c0_21] : memref<1x128xf32, #tpu.memory_space<vmem>>, vector<1x128xf32>
    %41 = arith.truncf %38 : vector<8x128xf32> to vector<8x128xbf16>
    %cst_22 = arith.constant dense<0.000000e+00> : vector<8x128xf32>
    %42 = tpu.matmul %41, %39, %cst_22 {dimension_numbers = #tpu.dot_dimension_numbers<[1], [0], [0], [1], [0, 0, 1, 1], [], []>} : vector<8x128xbf16>, vector<128x128xbf16>, vector<8x128xf32> -> vector<8x128xf32>
    %43 = vector.broadcast %40 : vector<1x128xf32> to vector<8x128xf32>
    %44 = arith.addf %42, %43 : vector<8x128xf32>
    %c0_23 = arith.constant 0 : index
    %c0_24 = arith.constant 0 : index
    %45 = vector.load %arg8[%c0_23, %c0_24] : memref<8x128xf32, #tpu.memory_space<vmem>>, vector<8x128xf32>
    tpu.vector_store %arg8[%c0_23, %c0_24], %44 {strides = array<i32>} : memref<8x128xf32, #tpu.memory_space<vmem>>, vector<8x128xf32>,
    return
  }
  func.func @transform_0(%arg0: i32) -> (i32, i32) {
    %c0_i32 = arith.constant 0 : i32
    %c0_i32_0 = arith.constant 0 : i32
    return %arg0, %c0_i32 : i32, i32
  }
  func.func @transform_1(%arg0: i32) -> (i32, i32) {
    %c0_i32 = arith.constant 0 : i32
    %c0_i32_0 = arith.constant 0 : i32
    %c0_i32_1 = arith.constant 0 : i32
    return %c0_i32, %c0_i32_0 : i32, i32
  }
  func.func @transform_2(%arg0: i32) -> (i32, i32) {
    %c0_i32 = arith.constant 0 : i32
    %c0_i32_0 = arith.constant 0 : i32
    %c0_i32_1 = arith.constant 0 : i32
    return %c0_i32, %c0_i32_0 : i32, i32
  }
  func.func @transform_3(%arg0: i32) -> (i32, i32) {
    %c0_i32 = arith.constant 0 : i32
    %c0_i32_0 = arith.constant 0 : i32
    %c0_i32_1 = arith.constant 0 : i32
    return %c0_i32, %c0_i32_0 : i32, i32
  }
  func.func @transform_4(%arg0: i32) -> (i32, i32) {
    %c0_i32 = arith.constant 0 : i32
    %c0_i32_0 = arith.constant 0 : i32
    %c0_i32_1 = arith.constant 0 : i32
    return %c0_i32, %c0_i32_0 : i32, i32
  }
  func.func @transform_5(%arg0: i32) -> (i32, i32) {
    %c0_i32 = arith.constant 0 : i32
    %c0_i32_0 = arith.constant 0 : i32
    %c0_i32_1 = arith.constant 0 : i32
    return %c0_i32, %c0_i32_0 : i32, i32
  }
  func.func @transform_6(%arg0: i32) -> (i32, i32) {
    %c0_i32 = arith.constant 0 : i32
    %c0_i32_0 = arith.constant 0 : i32
    %c0_i32_1 = arith.constant 0 : i32
    return %c0_i32, %c0_i32_0 : i32, i32
  }
  func.func @transform_7(%arg0: i32) -> (i32, i32) {
    %c0_i32 = arith.constant 0 : i32
    %c0_i32_0 = arith.constant 0 : i32
    return %arg0, %c0_i32 : i32, i32
  }
}

</mosaic_0001>

<llo_original>
// kernel: _actor_forward.1
$region0: #{_actor_forward.1}
  #allocation0 [shape = 'u32[]', space=smem, size = 0x4, offset = 0x4, fixed_abs, tag = 'smem constant byte address 0x4 - core index']
  #allocation1 [shape = 'u32[144,128]{1,0:T(1,128)}', space=vmem, size = 0x12000, scoped, tag = 'internal scratch']
  %s0 = inlined_call_operand.vmem [shape: f32[8,128], index: 0, kind: input, shape index: {}]
  %s1 = inlined_call_operand.hbm [shape: bf16[128,128], index: 1, kind: input, shape index: {}]
  %s2 = inlined_call_operand.vmem [shape: f32[1,128], index: 2, kind: input, shape index: {}]
  %s3 = inlined_call_operand.hbm [shape: bf16[128,128], index: 3, kind: input, shape index: {}]
  %s4 = inlined_call_operand.vmem [shape: f32[1,128], index: 4, kind: input, shape index: {}]
  %s5 = inlined_call_operand.hbm [shape: bf16[128,128], index: 5, kind: input, shape index: {}]
  %s6 = inlined_call_operand.vmem [shape: f32[1,128], index: 6, kind: input, shape index: {}]
  %s7 = inlined_call_operand.hbm [shape: f32[8,128], index: 7, kind: output, shape index: {}]
  %s8 = sld [smem:[#allocation0]]
  $region50: #{_actor_forward.1} parent=0
    _
  %s10 = ssub.s32 1, %s8
  %s11 = scalar_select 0, %s10, %s8
  $region1: #{_actor_forward.1} parent=0
    #allocation2 [shape = 'u8[32768]{0}', space=vmem, size = 0x8000, scoped, tag = 'input window, operand 1, single buffered']
    #allocation3 [shape = 's32[1]{0}', space=sflag, size = 0x4, scoped, tag = 'scoped memory for _actor_forward.1']
    #allocation4 [shape = 's32[1]{0}', space=sflag, size = 0x4, scoped, tag = 'scoped memory for _actor_forward.1']
    #allocation5 [shape = 'u8[32768]{0}', space=vmem, size = 0x8000, scoped, tag = 'input window, operand 3, single buffered']
    #allocation6 [shape = 's32[1]{0}', space=sflag, size = 0x4, scoped, tag = 'scoped memory for _actor_forward.1']
    #allocation7 [shape = 'u8[32768]{0}', space=vmem, size = 0x8000, scoped, tag = 'input window, operand 5, single buffered']
    #allocation8 [shape = 'u8[4096]{0}', space=vmem, size = 0x1000, scoped, tag = 'output window, operand 0, single buffered']
    %12 = vsyncpa [#allocation3], 0
    %13 = vsyncpa [#allocation6], 0
    %14 = vsyncpa [#allocation4], 0
    // Predicated region
    $region2: #{_actor_forward.1} parent=1 // pred_check
      _
    $region3: #{_actor_forward.1} parent=1 // pred_check_branch
      %16 = sbr.rel (0) target = $region5
    $region4: #{_actor_forward.1} parent=1 // pred_region
      _
    $region5: #{_actor_forward.1} parent=1 // pred_fallthru
      _
    // Predicated region
    $region6: #{_actor_forward.1} parent=1 // pred_check
      _
    $region7: #{_actor_forward.1} parent=1 // pred_check_branch
      %18 = sbr.rel (0) target = $region9
    $region8: #{_actor_forward.1} parent=1 // pred_region
      %s20 = ssub.s32 1024, 1024
      %21 = vsyncadd [#allocation3], %s20
      %s22 = sshll.u32 [#allocation2], 4
      %s23 = int_to_ptr.vmem [resolvable:$true] %s22
      %28 = dma.hbm_to_vmem [thread:$0]  %s1, 1024, %s23, [#allocation3], 64, 64, 4
    $region9: #{_actor_forward.1} parent=1 // pred_fallthru
      _
    // Predicated region
    $region10: #{_actor_forward.1} parent=1 // pred_check
      _
    $region11: #{_actor_forward.1} parent=1 // pred_check_branch
      %30 = sbr.rel (0) target = $region13
    $region12: #{_actor_forward.1} parent=1 // pred_region
      _
    $region13: #{_actor_forward.1} parent=1 // pred_fallthru
      _
    // Predicated region
    $region14: #{_actor_forward.1} parent=1 // pred_check
      _
    $region15: #{_actor_forward.1} parent=1 // pred_check_branch
      %32 = sbr.rel (0) target = $region17
    $region16: #{_actor_forward.1} parent=1 // pred_region
      %s34 = ssub.s32 1024, 1024
      %35 = vsyncadd [#allocation6], %s34
      %s36 = sshll.u32 [#allocation5], 4
      %s37 = int_to_ptr.vmem [resolvable:$true] %s36
      %42 = dma.hbm_to_vmem [thread:$0]  %s3, 1024, %s37, [#allocation6], 64, 64, 4
    $region17: #{_actor_forward.1} parent=1 // pred_fallthru
      _
    // Predicated region
    $region18: #{_actor_forward.1} parent=1 // pred_check
      _
    $region19: #{_actor_forward.1} parent=1 // pred_check_branch
      %44 = sbr.rel (0) target = $region21
    $region20: #{_actor_forward.1} parent=1 // pred_region
      _
    $region21: #{_actor_forward.1} parent=1 // pred_fallthru
      _
    // Predicated region
    $region22: #{_actor_forward.1} parent=1 // pred_check
      _
    $region23: #{_actor_forward.1} parent=1 // pred_check_branch
      %46 = sbr.rel (0) target = $region25
    $region24: #{_actor_forward.1} parent=1 // pred_region
      %s48 = ssub.s32 1024, 1024
      %49 = vsyncadd [#allocation6], %s48
      %s50 = sshll.u32 [#allocation7], 4
      %s51 = int_to_ptr.vmem [resolvable:$true] %s50
      %56 = dma.hbm_to_vmem [thread:$0]  %s5, 1024, %s51, [#allocation6], 64, 64, 4
    $region25: #{_actor_forward.1} parent=1 // pred_fallthru
      _
    // Predicated region
    $region26: #{_actor_forward.1} parent=1 // pred_check
      _
    $region27: #{_actor_forward.1} parent=1 // pred_check_branch
      %58 = sbr.rel (0) target = $region29
    $region28: #{_actor_forward.1} parent=1 // pred_region
      _
    $region29: #{_actor_forward.1} parent=1 // pred_fallthru
      _
    // Predicated region
    $region30: #{_actor_forward.1} parent=1 // pred_check
      _
    $region31: #{_actor_forward.1} parent=1 // pred_check_branch
      %60 = sbr.rel (0) target = $region33
    $region32: #{_actor_forward.1} parent=1 // pred_region
      %61 = dma.done [#allocation3], 1024
    $region33: #{_actor_forward.1} parent=1 // pred_fallthru
      _
    // Predicated region
    $region34: #{_actor_forward.1} parent=1 // pred_check
      _
    $region35: #{_actor_forward.1} parent=1 // pred_check_branch
      %63 = sbr.rel (0) target = $region37
    $region36: #{_actor_forward.1} parent=1 // pred_region
      %64 = dma.done [#allocation6], 1024
    $region37: #{_actor_forward.1} parent=1 // pred_fallthru
      _
    // Predicated region
    $region38: #{_actor_forward.1} parent=1 // pred_check
      _
    $region39: #{_actor_forward.1} parent=1 // pred_check_branch
      %66 = sbr.rel (0) target = $region41
    $region40: #{_actor_forward.1} parent=1 // pred_region
      %67 = dma.done [#allocation6], 1024
    $region41: #{_actor_forward.1} parent=1 // pred_fallthru
      _
    %v69 = vld [vmem:[%s0] sm:$0xff]
    %v70 = vld [vmem:[#allocation2] sm:$0xf]
    %v71 = vld [vmem:[#allocation2 + $0x4] sm:$0xf]
    %v72 = vld [vmem:[#allocation2 + $0x8] sm:$0xf]
    %v73 = vld [vmem:[#allocation2 + $0xc] sm:$0xf]
    %v74 = vld [vmem:[#allocation2 + $0x10] sm:$0xf]
    %v75 = vld [vmem:[#allocation2 + $0x14] sm:$0xf]
    %v76 = vld [vmem:[#allocation2 + $0x18] sm:$0xf]
    %v77 = vld [vmem:[#allocation2 + $0x1c] sm:$0xf]
    %v78 = vld [vmem:[#allocation2 + $0x20] sm:$0xf]
    %v79 = vld [vmem:[#allocation2 + $0x24] sm:$0xf]
    %v80 = vld [vmem:[#allocation2 + $0x28] sm:$0xf]
    %v81 = vld [vmem:[#allocation2 + $0x2c] sm:$0xf]
    %v82 = vld [vmem:[#allocation2 + $0x30] sm:$0xf]
    %v83 = vld [vmem:[#allocation2 + $0x34] sm:$0xf]
    %v84 = vld [vmem:[#allocation2 + $0x38] sm:$0xf]
    %v85 = vld [vmem:[#allocation2 + $0x3c] sm:$0xf]
    %v86 = vld [vmem:[%s2] sm:$0x1]
    %v87 = vpack.c.bf16 %v69, %v69
    %v89 = vlaneseq
    %v90 = vshrl.u32 %v89, 7
    %v91 = vsub.s32 0, %v90
    %v92 = vrot.slane %v86, %v91
    %v110 = vunpack.c.l.b16 %v70
    %v111 = vunpack.c.l.b16 %v71
    %v112 = vunpack.c.l.b16 %v72
    %v113 = vunpack.c.l.b16 %v73
    %v114 = vunpack.c.l.b16 %v74
    %v115 = vunpack.c.l.b16 %v75
    %v116 = vunpack.c.l.b16 %v76
    %v117 = vunpack.c.l.b16 %v77
    %v118 = vunpack.c.l.b16 %v78
    %v119 = vunpack.c.l.b16 %v79
    %v120 = vunpack.c.l.b16 %v80
    %v121 = vunpack.c.l.b16 %v81
    %v122 = vunpack.c.l.b16 %v82
    %v123 = vunpack.c.l.b16 %v83
    %v124 = vunpack.c.l.b16 %v84
    %v125 = vunpack.c.l.b16 %v85
    %v126 = vpack.c.b16 %v111, %v110
    %v127 = vpack.c.b16 %v113, %v112
    %v128 = vpack.c.b16 %v115, %v114
    %v129 = vpack.c.b16 %v117, %v116
    %v130 = vpack.c.b16 %v119, %v118
    %v131 = vpack.c.b16 %v121, %v120
    %v132 = vpack.c.b16 %v123, %v122
    %v133 = vpack.c.b16 %v125, %v124
    %142 = vmatprep.subr.bf16.mxu0 0
    %143 = vmatpush1.bf16.msra.mxu0 %v126
    %144 = vmatprep.subr.bf16.mxu0 0
    %145 = vmatpush1.bf16.msra.mxu0 %v127
    %146 = vmatprep.subr.bf16.mxu0 0
    %147 = vmatpush1.bf16.msra.mxu0 %v128
    %148 = vmatprep.subr.bf16.mxu0 0
    %149 = vmatpush1.bf16.msra.mxu0 %v129
    %150 = vmatprep.subr.bf16.mxu0 0
    %151 = vmatpush1.bf16.msra.mxu0 %v130
    %152 = vmatprep.subr.bf16.mxu0 0
    %153 = vmatpush1.bf16.msra.mxu0 %v131
    %154 = vmatprep.subr.bf16.mxu0 0
    %155 = vmatpush1.bf16.msra.mxu0 %v132
    %156 = vmatprep.subr.bf16.mxu0 0
    %157 = vmatpush1.bf16.msra.mxu0 %v133
    %158 = vmatprep.subr.bf16.mxu0 0
    %159 = vmatpush1.bf16.msra.mxu0 0
    %160 = vmatprep.subr.bf16.mxu0 0
    %161 = vmatpush1.bf16.msra.mxu0 0
    %162 = vmatprep.subr.bf16.mxu0 0
    %163 = vmatpush1.bf16.msra.mxu0 0
    %164 = vmatprep.subr.bf16.mxu0 0
    %165 = vmatpush1.bf16.msra.mxu0 0
    %166 = vmatprep.subr.bf16.mxu0 0
    %167 = vmatpush1.bf16.msra.mxu0 0
    %168 = vmatprep.subr.bf16.mxu0 0
    %169 = vmatpush1.bf16.msra.mxu0 0
    %170 = vmatprep.subr.bf16.mxu0 0
    %171 = vmatpush1.bf16.msra.mxu0 0
    %172 = vmatprep.subr.bf16.mxu0 0
    %173 = vmatpush1.bf16.msra.mxu0 0
    %174 = vmatprep.mubr.bf16.mxu0 0
    %175 = vmatmul.mubr.bf16.gmra.mrb[0].mxu0 %v87
    %v176 = vpop.f32.mrb[0].mxu0
    %v177 = vadd.f32 %v92, %v176
    %v178 = vpop.f32.mrb[0].mxu0
    %v179 = vpop.f32.mrb[0].mxu0
    %v180 = vpop.f32.mrb[0].mxu0
    %181 = vdwg.mxu0
    %v182 = vmul.f32 %v177, 0.5
    %v183 = vmul.f32 %v177, 0.044715
    %v184 = vmul.f32 %v183, %v177
    %v185 = vmul.f32 %v184, %v177
    %v186 = vadd.f32 %v177, %v185
    %v187 = vmul.f32 %v186, 0.7978846
    %v188 = vtanh.pop %v187
    %v189 = vadd.f32 %v188, 1.0
    %v190 = vmul.f32 %v182, %v189
    %v191 = vld [vmem:[#allocation5] sm:$0xf]
    %v192 = vld [vmem:[#allocation5 + $0x4] sm:$0xf]
    %v193 = vld [vmem:[#allocation5 + $0x8] sm:$0xf]
    %v194 = vld [vmem:[#allocation5 + $0xc] sm:$0xf]
    %v195 = vld [vmem:[#allocation5 + $0x10] sm:$0xf]
    %v196 = vld [vmem:[#allocation5 + $0x14] sm:$0xf]
    %v197 = vld [vmem:[#allocation5 + $0x18] sm:$0xf]
    %v198 = vld [vmem:[#allocation5 + $0x1c] sm:$0xf]
    %v199 = vld [vmem:[#allocation5 + $0x20] sm:$0xf]
    %v200 = vld [vmem:[#allocation5 + $0x24] sm:$0xf]
    %v201 = vld [vmem:[#allocation5 + $0x28] sm:$0xf]
    %v202 = vld [vmem:[#allocation5 + $0x2c] sm:$0xf]
    %v203 = vld [vmem:[#allocation5 + $0x30] sm:$0xf]
    %v204 = vld [vmem:[#allocation5 + $0x34] sm:$0xf]
    %v205 = vld [vmem:[#allocation5 + $0x38] sm:$0xf]
    %v206 = vld [vmem:[#allocation5 + $0x3c] sm:$0xf]
    %v207 = vld [vmem:[%s4] sm:$0x1]
    %v208 = vpack.c.bf16 %v190, %v190
    %v210 = vlaneseq
    %v211 = vshrl.u32 %v210, 7
    %v212 = vsub.s32 0, %v211
    %v213 = vrot.slane %v207, %v212
    %v231 = vunpack.c.l.b16 %v191
    %v232 = vunpack.c.l.b16 %v192
    %v233 = vunpack.c.l.b16 %v193
    %v234 = vunpack.c.l.b16 %v194
    %v235 = vunpack.c.l.b16 %v195
    %v236 = vunpack.c.l.b16 %v196
    %v237 = vunpack.c.l.b16 %v197
    %v238 = vunpack.c.l.b16 %v198
    %v239 = vunpack.c.l.b16 %v199
    %v240 = vunpack.c.l.b16 %v200
    %v241 = vunpack.c.l.b16 %v201
    %v242 = vunpack.c.l.b16 %v202
    %v243 = vunpack.c.l.b16 %v203
    %v244 = vunpack.c.l.b16 %v204
    %v245 = vunpack.c.l.b16 %v205
    %v246 = vunpack.c.l.b16 %v206
    %v247 = vpack.c.b16 %v232, %v231
    %v248 = vpack.c.b16 %v234, %v233
    %v249 = vpack.c.b16 %v236, %v235
    %v250 = vpack.c.b16 %v238, %v237
    %v251 = vpack.c.b16 %v240, %v239
    %v252 = vpack.c.b16 %v242, %v241
    %v253 = vpack.c.b16 %v244, %v243
    %v254 = vpack.c.b16 %v246, %v245
    %263 = vmatprep.subr.bf16.mxu0 0
    %264 = vmatpush1.bf16.msra.mxu0 %v247
    %265 = vmatprep.subr.bf16.mxu0 0
    %266 = vmatpush1.bf16.msra.mxu0 %v248
    %267 = vmatprep.subr.bf16.mxu0 0
    %268 = vmatpush1.bf16.msra.mxu0 %v249
    %269 = vmatprep.subr.bf16.mxu0 0
    %270 = vmatpush1.bf16.msra.mxu0 %v250
    %271 = vmatprep.subr.bf16.mxu0 0
    %272 = vmatpush1.bf16.msra.mxu0 %v251
    %273 = vmatprep.subr.bf16.mxu0 0
    %274 = vmatpush1.bf16.msra.mxu0 %v252
    %275 = vmatprep.subr.bf16.mxu0 0
    %276 = vmatpush1.bf16.msra.mxu0 %v253
    %277 = vmatprep.subr.bf16.mxu0 0
    %278 = vmatpush1.bf16.msra.mxu0 %v254
    %279 = vmatprep.subr.bf16.mxu0 0
    %280 = vmatpush1.bf16.msra.mxu0 0
    %281 = vmatprep.subr.bf16.mxu0 0
    %282 = vmatpush1.bf16.msra.mxu0 0
    %283 = vmatprep.subr.bf16.mxu0 0
    %284 = vmatpush1.bf16.msra.mxu0 0
    %285 = vmatprep.subr.bf16.mxu0 0
    %286 = vmatpush1.bf16.msra.mxu0 0
    %287 = vmatprep.subr.bf16.mxu0 0
    %288 = vmatpush1.bf16.msra.mxu0 0
    %289 = vmatprep.subr.bf16.mxu0 0
    %290 = vmatpush1.bf16.msra.mxu0 0
    %291 = vmatprep.subr.bf16.mxu0 0
    %292 = vmatpush1.bf16.msra.mxu0 0
    %293 = vmatprep.subr.bf16.mxu0 0
    %294 = vmatpush1.bf16.msra.mxu0 0
    %295 = vmatprep.mubr.bf16.mxu0 0
    %296 = vmatmul.mubr.bf16.gmra.mrb[0].mxu0 %v208
    %v297 = vpop.f32.mrb[0].mxu0
    %v298 = vadd.f32 %v213, %v297
    %v299 = vpop.f32.mrb[0].mxu0
    %v300 = vpop.f32.mrb[0].mxu0
    %v301 = vpop.f32.mrb[0].mxu0
    %302 = vdwg.mxu0
    %v303 = vmul.f32 %v298, 0.5
    %v304 = vmul.f32 %v298, 0.044715
    %v305 = vmul.f32 %v304, %v298
    %v306 = vmul.f32 %v305, %v298
    %v307 = vadd.f32 %v298, %v306
    %v308 = vmul.f32 %v307, 0.7978846
    %v309 = vtanh.pop %v308
    %v310 = vadd.f32 %v309, 1.0
    %v311 = vmul.f32 %v303, %v310
    %v312 = vld [vmem:[#allocation7] sm:$0xf]
    %v313 = vld [vmem:[#allocation7 + $0x4] sm:$0xf]
    %v314 = vld [vmem:[#allocation7 + $0x8] sm:$0xf]
    %v315 = vld [vmem:[#allocation7 + $0xc] sm:$0xf]
    %v316 = vld [vmem:[#allocation7 + $0x10] sm:$0xf]
    %v317 = vld [vmem:[#allocation7 + $0x14] sm:$0xf]
    %v318 = vld [vmem:[#allocation7 + $0x18] sm:$0xf]
    %v319 = vld [vmem:[#allocation7 + $0x1c] sm:$0xf]
    %v320 = vld [vmem:[#allocation7 + $0x20] sm:$0xf]
    %v321 = vld [vmem:[#allocation7 + $0x24] sm:$0xf]
    %v322 = vld [vmem:[#allocation7 + $0x28] sm:$0xf]
    %v323 = vld [vmem:[#allocation7 + $0x2c] sm:$0xf]
    %v324 = vld [vmem:[#allocation7 + $0x30] sm:$0xf]
    %v325 = vld [vmem:[#allocation7 + $0x34] sm:$0xf]
    %v326 = vld [vmem:[#allocation7 + $0x38] sm:$0xf]
    %v327 = vld [vmem:[#allocation7 + $0x3c] sm:$0xf]
    %v328 = vld [vmem:[%s6] sm:$0x1]
    %v329 = vpack.c.bf16 %v311, %v311
    %v331 = vlaneseq
    %v332 = vshrl.u32 %v331, 7
    %v333 = vsub.s32 0, %v332
    %v334 = vrot.slane %v328, %v333
    %v352 = vunpack.c.l.b16 %v312
    %v353 = vunpack.c.l.b16 %v313
    %v354 = vunpack.c.l.b16 %v314
    %v355 = vunpack.c.l.b16 %v315
    %v356 = vunpack.c.l.b16 %v316
    %v357 = vunpack.c.l.b16 %v317
    %v358 = vunpack.c.l.b16 %v318
    %v359 = vunpack.c.l.b16 %v319
    %v360 = vunpack.c.l.b16 %v320
    %v361 = vunpack.c.l.b16 %v321
    %v362 = vunpack.c.l.b16 %v322
    %v363 = vunpack.c.l.b16 %v323
    %v364 = vunpack.c.l.b16 %v324
    %v365 = vunpack.c.l.b16 %v325
    %v366 = vunpack.c.l.b16 %v326
    %v367 = vunpack.c.l.b16 %v327
    %v368 = vpack.c.b16 %v353, %v352
    %v369 = vpack.c.b16 %v355, %v354
    %v370 = vpack.c.b16 %v357, %v356
    %v371 = vpack.c.b16 %v359, %v358
    %v372 = vpack.c.b16 %v361, %v360
    %v373 = vpack.c.b16 %v363, %v362
    %v374 = vpack.c.b16 %v365, %v364
    %v375 = vpack.c.b16 %v367, %v366
    %384 = vmatprep.subr.bf16.mxu0 0
    %385 = vmatpush1.bf16.msra.mxu0 %v368
    %386 = vmatprep.subr.bf16.mxu0 0
    %387 = vmatpush1.bf16.msra.mxu0 %v369
    %388 = vmatprep.subr.bf16.mxu0 0
    %389 = vmatpush1.bf16.msra.mxu0 %v370
    %390 = vmatprep.subr.bf16.mxu0 0
    %391 = vmatpush1.bf16.msra.mxu0 %v371
    %392 = vmatprep.subr.bf16.mxu0 0
    %393 = vmatpush1.bf16.msra.mxu0 %v372
    %394 = vmatprep.subr.bf16.mxu0 0
    %395 = vmatpush1.bf16.msra.mxu0 %v373
    %396 = vmatprep.subr.bf16.mxu0 0
    %397 = vmatpush1.bf16.msra.mxu0 %v374
    %398 = vmatprep.subr.bf16.mxu0 0
    %399 = vmatpush1.bf16.msra.mxu0 %v375
    %400 = vmatprep.subr.bf16.mxu0 0
    %401 = vmatpush1.bf16.msra.mxu0 0
    %402 = vmatprep.subr.bf16.mxu0 0
    %403 = vmatpush1.bf16.msra.mxu0 0
    %404 = vmatprep.subr.bf16.mxu0 0
    %405 = vmatpush1.bf16.msra.mxu0 0
    %406 = vmatprep.subr.bf16.mxu0 0
    %407 = vmatpush1.bf16.msra.mxu0 0
    %408 = vmatprep.subr.bf16.mxu0 0
    %409 = vmatpush1.bf16.msra.mxu0 0
    %410 = vmatprep.subr.bf16.mxu0 0
    %411 = vmatpush1.bf16.msra.mxu0 0
    %412 = vmatprep.subr.bf16.mxu0 0
    %413 = vmatpush1.bf16.msra.mxu0 0
    %414 = vmatprep.subr.bf16.mxu0 0
    %415 = vmatpush1.bf16.msra.mxu0 0
    %416 = vmatprep.mubr.bf16.mxu0 0
    %417 = vmatmul.mubr.bf16.gmra.mrb[0].mxu0 %v329
    %v418 = vpop.f32.mrb[0].mxu0
    %v419 = vadd.f32 %v334, %v418
    %v420 = vpop.f32.mrb[0].mxu0
    %v421 = vpop.f32.mrb[0].mxu0
    %v422 = vpop.f32.mrb[0].mxu0
    %423 = vdwg.mxu0
    %424 = vst [vmem:[#allocation8] sm:$0xff] %v419
    // Predicated region
    $region42: #{_actor_forward.1} parent=1 // pred_check
      _
    $region43: #{_actor_forward.1} parent=1 // pred_check_branch
      %426 = sbr.rel (0) target = $region45
    $region44: #{_actor_forward.1} parent=1 // pred_region
      %s428 = ssub.s32 128, 128
      %429 = vsyncadd [#allocation4], %s428
      %s431 = sshll.u32 [#allocation8], 4
      %s432 = int_to_ptr.vmem [resolvable:$true] %s431
      %434 = dma.vmem_to_hbm [thread:$0]  %s432, 128, %s7, [#allocation4]
    $region45: #{_actor_forward.1} parent=1 // pred_fallthru
      _
    // Predicated region
    $region46: #{_actor_forward.1} parent=1 // pred_check
      _
    $region47: #{_actor_forward.1} parent=1 // pred_check_branch
      %436 = sbr.rel (0) target = $region49
    $region48: #{_actor_forward.1} parent=1 // pred_region
      %437 = dma.done [#allocation4], 128
    $region49: #{_actor_forward.1} parent=1 // pred_fallthru
      _
    %438 = vsyncpa [#allocation3], 1
    %439 = vsyncpa [#allocation6], 1
    %440 = vsyncpa [#allocation4], 1

</llo_original>
